<compile_context>
chip_gen: v5e
topology: v5e:2x2
jax: 0.10.0
libtpu: 0.0.40
codegen_flags: <defaults>
</compile_context>

<pallas_src>
import functools
import math

import jax
import jax.numpy as jnp
from jax.experimental import pallas as pl
from jax.experimental.pallas import tpu as pltpu


# ----------------------------------------------------------------------------
# tile helpers
# ----------------------------------------------------------------------------
def _pick_tile(dim: int, cap: int, align: int) -> int:
    """Largest tile <= cap that divides dim and is a multiple of `align`,
    or the full dim if dim <= cap (full-dim blocks are exempt from the
    (8,128) rule)."""
    if dim <= cap:
        return dim
    t = cap - (cap % align) if cap % align else cap
    while t >= align:
        if dim % t == 0:
            return t
        t -= align
    return dim


# ----------------------------------------------------------------------------
# LayerNorm kernel (row-tiled)
# ----------------------------------------------------------------------------
def _layernorm_kernel(x_ref, g_ref, b_ref, o_ref, *, eps):
    x = x_ref[...].astype(jnp.float32)                      # (TR, H)
    mean = jnp.mean(x, axis=-1, keepdims=True)
    xc = x - mean
    var = jnp.mean(xc * xc, axis=-1, keepdims=True)
    inv = jax.lax.rsqrt(var + eps)
    y = xc * inv * g_ref[...] + b_ref[...]
    o_ref[...] = y.astype(o_ref.dtype)


def pallas_layernorm(x2d, gamma, beta, eps):
    R, H = x2d.shape
    tr = _pick_tile(R, 512, 8)
    grid = (R // tr,)
    kernel = functools.partial(_layernorm_kernel, eps=eps)
    return pl.pallas_call(
        kernel,
        out_shape=jax.ShapeDtypeStruct((R, H), x2d.dtype),
        grid_spec=pltpu.PrefetchScalarGridSpec(
            num_scalar_prefetch=0,
            grid=grid,
            in_specs=[
                pl.BlockSpec((tr, H), lambda i: (i, 0)),
                pl.BlockSpec((1, H), lambda i: (0, 0)),
                pl.BlockSpec((1, H), lambda i: (0, 0)),
            ],
            out_specs=pl.BlockSpec((tr, H), lambda i: (i, 0)),
        ),
        compiler_params=pltpu.CompilerParams(dimension_semantics=("parallel",)),
    )(x2d, gamma.reshape(1, H), beta.reshape(1, H))


# ----------------------------------------------------------------------------
# Linear (matmul + bias) kernel, tiled over (M, N, K) with f32 accumulator
# ----------------------------------------------------------------------------
def _linear_kernel(x_ref, w_ref, b_ref, o_ref, acc_ref):
    k = pl.program_id(2)

    @pl.when(k == 0)
    def _():
        acc_ref[...] = jnp.zeros_like(acc_ref)

    acc_ref[...] += jnp.dot(
        x_ref[...], w_ref[...], preferred_element_type=jnp.float32
    )

    @pl.when(k == pl.num_programs(2) - 1)
    def _():
        o_ref[...] = (acc_ref[...] + b_ref[...]).astype(o_ref.dtype)


def pallas_linear(x2d, w, b):
    M, K = x2d.shape
    K2, N = w.shape
    assert K == K2
    tm = _pick_tile(M, 256, 8)
    tn = _pick_tile(N, 256, 128)
    tk = _pick_tile(K, 512, 128)
    grid = (M // tm, N // tn, K // tk)
    return pl.pallas_call(
        _linear_kernel,
        out_shape=jax.ShapeDtypeStruct((M, N), x2d.dtype),
        grid_spec=pltpu.PrefetchScalarGridSpec(
            num_scalar_prefetch=0,
            grid=grid,
            in_specs=[
                pl.BlockSpec((tm, tk), lambda i, j, k: (i, k)),
                pl.BlockSpec((tk, tn), lambda i, j, k: (k, j)),
                pl.BlockSpec((1, tn), lambda i, j, k: (0, j)),
            ],
            out_specs=pl.BlockSpec((tm, tn), lambda i, j, k: (i, j)),
            scratch_shapes=[pltpu.VMEM((tm, tn), jnp.float32)],
        ),
        compiler_params=pltpu.CompilerParams(
            dimension_semantics=("parallel", "parallel", "arbitrary")
        ),
    )(x2d, w, b.reshape(1, N))


# ----------------------------------------------------------------------------
# Fused masked attention kernel: one (batch, head) tile per grid step
#   scores = (q @ k^T) * scale
#   scores = scores * mask + neg * (1 - mask)
#   ctx    = softmax(scores) @ v
# ----------------------------------------------------------------------------
def _attention_kernel(q_ref, k_ref, v_ref, m_ref, o_ref, *, scale, neg):
    q = q_ref[...].astype(jnp.float32)                      # (Sq, hn)
    k = k_ref[...].astype(jnp.float32)                      # (Sk, hn)
    v = v_ref[...].astype(jnp.float32)                      # (Sk, hn)
    m = m_ref[...].astype(jnp.float32)                      # (Sq, Sk)
    scores = jax.lax.dot_general(
        q, k, (((1,), (1,)), ((), ())), preferred_element_type=jnp.float32
    ) * scale                                               # (Sq, Sk)
    scores = scores * m + neg * (1.0 - m)
    scores = scores - jnp.max(scores, axis=-1, keepdims=True)
    p = jnp.exp(scores)
    p = p * pl.reciprocal(jnp.sum(p, axis=-1, keepdims=True), approx=False)
    ctx = jnp.dot(p, v, preferred_element_type=jnp.float32)
    o_ref[...] = ctx.astype(o_ref.dtype)
    # TODO(synk): attention_dropout (train-mode RNG fork) not implemented; eval mode.


def pallas_attention(q, k, v, mask, scale, neg):
    B, nh, Sq, hn = q.shape
    Sk = k.shape[2]
    mask_b = jnp.broadcast_to(mask.astype(q.dtype), (B, 1, Sq, Sk))
    kernel = functools.partial(_attention_kernel, scale=scale, neg=neg)
    return pl.pallas_call(
        kernel,
        out_shape=jax.ShapeDtypeStruct((B, nh, Sq, hn), q.dtype),
        grid_spec=pltpu.PrefetchScalarGridSpec(
            num_scalar_prefetch=0,
            grid=(B, nh),
            in_specs=[
                pl.BlockSpec((None, None, Sq, hn), lambda b, h: (b, h, 0, 0)),
                pl.BlockSpec((None, None, Sk, hn), lambda b, h: (b, h, 0, 0)),
                pl.BlockSpec((None, None, Sk, hn), lambda b, h: (b, h, 0, 0)),
                pl.BlockSpec((None, None, Sq, Sk), lambda b, h: (b, 0, 0, 0)),
            ],
            out_specs=pl.BlockSpec((None, None, Sq, hn), lambda b, h: (b, h, 0, 0)),
        ),
        compiler_params=pltpu.CompilerParams(
            dimension_semantics=("parallel", "parallel")
        ),
    )(q, k, v, mask_b)


# ----------------------------------------------------------------------------
# Fused MLP kernel: x @ w1 + b1 -> gelu -> @ w2 + b2, row-tiled, weights resident
# ----------------------------------------------------------------------------
def _gelu_f32(x):
    return 0.5 * x * (1.0 + jnp.tanh(0.7978845608028654 * x * (1.0 + 0.044715 * x * x)))


def _mlp_kernel(x_ref, w1_ref, b1_ref, w2_ref, b2_ref, o_ref):
    x = x_ref[...].astype(jnp.float32)                      # (TR, H)
    h = jnp.dot(x, w1_ref[...], preferred_element_type=jnp.float32) + b1_ref[...]
    h = _gelu_f32(h)
    y = jnp.dot(h, w2_ref[...], preferred_element_type=jnp.float32) + b2_ref[...]
    o_ref[...] = y.astype(o_ref.dtype)


def _gelu_kernel(x_ref, o_ref):
    o_ref[...] = _gelu_f32(x_ref[...].astype(jnp.float32)).astype(o_ref.dtype)


def pallas_gelu(x2d):
    R, C = x2d.shape
    tr = _pick_tile(R, 512, 8)
    return pl.pallas_call(
        _gelu_kernel,
        out_shape=jax.ShapeDtypeStruct((R, C), x2d.dtype),
        grid_spec=pltpu.PrefetchScalarGridSpec(
            num_scalar_prefetch=0,
            grid=(R // tr,),
            in_specs=[pl.BlockSpec((tr, C), lambda i: (i, 0))],
            out_specs=pl.BlockSpec((tr, C), lambda i: (i, 0)),
        ),
        compiler_params=pltpu.CompilerParams(dimension_semantics=("parallel",)),
    )(x2d)


def pallas_mlp(x2d, w1, b1, w2, b2):
    R, H = x2d.shape
    F = w1.shape[1]
    weight_bytes = (w1.size + w2.size) * 4
    if weight_bytes > (16 << 20):
        # Weights too large to keep resident in VMEM next to the activation tiles:
        # fall back to tiled linear -> gelu -> tiled linear.
        h = pallas_linear(x2d, w1, b1)
        h = pallas_gelu(h)
        return pallas_linear(h, w2, b2)
    tr = _pick_tile(R, 256, 8)
    return pl.pallas_call(
        _mlp_kernel,
        out_shape=jax.ShapeDtypeStruct((R, H), x2d.dtype),
        grid_spec=pltpu.PrefetchScalarGridSpec(
            num_scalar_prefetch=0,
            grid=(R // tr,),
            in_specs=[
                pl.BlockSpec((tr, H), lambda i: (i, 0)),
                pl.BlockSpec((H, F), lambda i: (0, 0)),
                pl.BlockSpec((1, F), lambda i: (0, 0)),
                pl.BlockSpec((F, H), lambda i: (0, 0)),
                pl.BlockSpec((1, H), lambda i: (0, 0)),
            ],
            out_specs=pl.BlockSpec((tr, H), lambda i: (i, 0)),
        ),
        compiler_params=pltpu.CompilerParams(dimension_semantics=("parallel",)),
    )(x2d, w1, b1.reshape(1, F), w2, b2.reshape(1, H))


# ----------------------------------------------------------------------------
# head reshape glue (zero-compute, left to XLA)
# ----------------------------------------------------------------------------
def _split_heads(x, num_heads):
    B, S, H = x.shape
    hn = H // num_heads
    return x.reshape(B, S, num_heads, hn).transpose(0, 2, 1, 3)     # (B, nh, S, hn)


def _merge_heads(x):
    B, nh, S, hn = x.shape
    return x.transpose(0, 2, 1, 3).reshape(B, S, nh * hn)


# ----------------------------------------------------------------------------
# ParallelDecoderLayer (JAX/Pallas port, world_size = 1, eval-mode dropout)
# ----------------------------------------------------------------------------
class ParallelDecoderLayer:
    def __init__(self, hidden_size, num_attention_heads,
                 layernorm_epsilon=1e-5, key=None, dtype=jnp.float32):
        assert hidden_size % num_attention_heads == 0
        assert hidden_size % 2 == 0
        self.hidden_size = hidden_size
        self.num_heads = num_attention_heads
        self.eps = layernorm_epsilon
        self.dtype = dtype
        if key is None:
            key = jax.random.PRNGKey(0)
        H = hidden_size
        ks = jax.random.split(key, 8)
        init = lambda k, shape: (0.02 * jax.random.normal(k, shape)).astype(dtype)
        zeros = lambda n: jnp.zeros((n,), dtype)
        ones = lambda n: jnp.ones((n,), dtype)
        self.params = dict(
            ln1_g=ones(H), ln1_b=zeros(H),
            ln2_g=ones(H), ln2_b=zeros(H),
            ln3_g=ones(H), ln3_b=zeros(H),
            # self attention
            w_qkv=init(ks[0], (H, 3 * H)), b_qkv=zeros(3 * H),
            w_o=init(ks[1], (H, H)), b_o=zeros(H),
            # cross attention
            w_q_c=init(ks[2], (H, H)), b_q_c=zeros(H),
            w_kv_c=init(ks[3], (H, 2 * H)), b_kv_c=zeros(2 * H),
            w_o_c=init(ks[4], (H, H)), b_o_c=zeros(H),
            # mlp
            w1=init(ks[5], (H, 4 * H)), b1=zeros(4 * H),
            w2=init(ks[6], (4 * H, H)), b2=zeros(H),
        )

    def __call__(self, hidden_states, encoder_states, ltor_mask, cross_mask=None):
        p = self.params
        B, S, H = hidden_states.shape
        Se = encoder_states.shape[1]
        nh = self.num_heads
        hn = H // nh
        scale = 1.0 / math.sqrt(hn)

        x2d = hidden_states.reshape(B * S, H)

        # --- self attention block ------------------------------------------
        ln1 = pallas_layernorm(x2d, p["ln1_g"], p["ln1_b"], self.eps)
        qkv = pallas_linear(ln1, p["w_qkv"], p["b_qkv"]).reshape(B, S, 3 * H)
        q, k, v = jnp.split(qkv, 3, axis=-1)
        q, k, v = (_split_heads(q, nh), _split_heads(k, nh), _split_heads(v, nh))
        ctx = pallas_attention(q, k, v, ltor_mask, scale, -65504.0)
        attn_out = pallas_linear(_merge_heads(ctx).reshape(B * S, H),
                                 p["w_o"], p["b_o"])
        # TODO(synk): output_dropout not implemented (eval mode).
        x1 = x2d + attn_out

        # --- cross attention block -----------------------------------------
        ln2 = pallas_layernorm(x1, p["ln2_g"], p["ln2_b"], self.eps)
        qc = pallas_linear(ln2, p["w_q_c"], p["b_q_c"]).reshape(B, S, H)
        kvc = pallas_linear(encoder_states.reshape(B * Se, H),
                            p["w_kv_c"], p["b_kv_c"]).reshape(B, Se, 2 * H)
        kc, vc = jnp.split(kvc, 2, axis=-1)
        qc, kc, vc = (_split_heads(qc, nh), _split_heads(kc, nh), _split_heads(vc, nh))
        if cross_mask is None:
            cmask = jnp.ones((1, 1, S, Se), self.dtype)
        else:
            cmask = cross_mask
        ctx_c = pallas_attention(qc, kc, vc, cmask, scale, -10000.0)
        cross_out = pallas_linear(_merge_heads(ctx_c).reshape(B * S, H),
                                  p["w_o_c"], p["b_o_c"])
        x2 = x1 + cross_out

        # --- MLP block -------------------------------------------------------
        ln3 = pallas_layernorm(x2, p["ln3_g"], p["ln3_b"], self.eps)
        mlp_out = pallas_mlp(ln3, p["w1"], p["b1"], p["w2"], p["b2"])
        out = x2 + mlp_out
        return out.reshape(B, S, H)


# ----------------------------------------------------------------------------
# pure-JAX reference (mirrors the PyTorch forward, eval mode)
# ----------------------------------------------------------------------------
def _reference_forward(params, hidden_states, encoder_states, ltor_mask,
                       cross_mask, num_heads, eps):
    hi = jax.lax.Precision.HIGHEST

    def ln(x, g, b):
        mu = x.mean(-1, keepdims=True)
        var = ((x - mu) ** 2).mean(-1, keepdims=True)
        return (x - mu) / jnp.sqrt(var + eps) * g + b

    def split_heads(x):
        B, S, H = x.shape
        return x.reshape(B, S, num_heads, H // num_heads).transpose(0, 2, 1, 3)

    def merge_heads(x):
        B, nh, S, hn = x.shape
        return x.transpose(0, 2, 1, 3).reshape(B, S, nh * hn)

    def attn(q, k, v, mask, neg):
        hn = q.shape[-1]
        s = jnp.einsum("bhqd,bhkd->bhqk", q, k, precision=hi) / math.sqrt(hn)
        s = s * mask + neg * (1.0 - mask)
        p_ = jax.nn.softmax(s, axis=-1)
        return merge_heads(jnp.einsum("bhqk,bhkd->bhqd", p_, v, precision=hi))

    p = params
    x = hidden_states
    ln1 = ln(x, p["ln1_g"], p["ln1_b"])
    qkv = jnp.einsum("bsh,hf->bsf", ln1, p["w_qkv"], precision=hi) + p["b_qkv"]
    q, k, v = jnp.split(qkv, 3, axis=-1)
    ctx = attn(split_heads(q), split_heads(k), split_heads(v), ltor_mask, -65504.0)
    x1 = x + jnp.einsum("bsh,hf->bsf", ctx, p["w_o"], precision=hi) + p["b_o"]

    ln2 = ln(x1, p["ln2_g"], p["ln2_b"])
    qc = jnp.einsum("bsh,hf->bsf", ln2, p["w_q_c"], precision=hi) + p["b_q_c"]
    kvc = jnp.einsum("bsh,hf->bsf", encoder_states, p["w_kv_c"], precision=hi) + p["b_kv_c"]
    kc, vc = jnp.split(kvc, 2, axis=-1)
    cm = cross_mask if cross_mask is not None else jnp.ones(
        (1, 1, x.shape[1], encoder_states.shape[1]), x.dtype)
    ctx_c = attn(split_heads(qc), split_heads(kc), split_heads(vc), cm, -10000.0)
    x2 = x1 + jnp.einsum("bsh,hf->bsf", ctx_c, p["w_o_c"], precision=hi) + p["b_o_c"]

    ln3 = ln(x2, p["ln3_g"], p["ln3_b"])
    h = jnp.einsum("bsh,hf->bsf", ln3, p["w1"], precision=hi) + p["b1"]
    h = 0.5 * h * (1.0 + jnp.tanh(0.7978845608028654 * h * (1.0 + 0.044715 * h * h)))
    mlp_out = jnp.einsum("bsf,fh->bsh", h, p["w2"], precision=hi) + p["b2"]
    return x2 + mlp_out


# ----------------------------------------------------------------------------
if __name__ == "__main__":
    key = jax.random.PRNGKey(0)
    B, S, Se, H, NH = 2, 8, 8, 32, 4

    k_layer, k_h, k_e, k_m = jax.random.split(key, 4)
    layer = ParallelDecoderLayer(H, NH, layernorm_epsilon=1e-5, key=k_layer)

    hidden_states = jax.random.normal(k_h, (B, S, H), dtype=jnp.float32)
    encoder_states = jax.random.normal(k_e, (B, Se, H), dtype=jnp.float32)
    # causal lower-triangular mask for self attention
    ltor_mask = jnp.tril(jnp.ones((S, S), jnp.float32)).reshape(1, 1, S, S)
    # random 0/1 cross mask (ensure at least one visible key per query row)
    cross_mask = (jax.random.uniform(k_m, (1, 1, S, Se)) > 0.3).astype(jnp.float32)
    cross_mask = cross_mask.at[:, :, :, 0].set(1.0)

    out = layer(hidden_states, encoder_states, ltor_mask, cross_mask)
    out = jax.block_until_ready(out)

    ref = _reference_forward(layer.params, hidden_states, encoder_states,
                             ltor_mask, cross_mask, NH, layer.eps)
    assert out.shape == (B, S, H), out.shape
    assert jnp.allclose(out, ref, atol=1e-3, rtol=1e-3), (
        float(jnp.max(jnp.abs(out - ref))))

    # also exercise the cross_mask=None path
    out2 = jax.block_until_ready(
        layer(hidden_states, encoder_states, ltor_mask, None))
    ref2 = _reference_forward(layer.params, hidden_states, encoder_states,
                              ltor_mask, None, NH, layer.eps)
    assert jnp.allclose(out2, ref2, atol=1e-3, rtol=1e-3)

    print("KERNEL_OK")
</pallas_src>

<mosaic_0001>
module attributes {stable_mosaic.version = 11 : i64} {
  func.func @_layernorm_kernel(%arg0: i32, %arg1: memref<16x32xf32, #tpu.memory_space<vmem>>, %arg2: memref<1x32xf32, #tpu.memory_space<vmem>>, %arg3: memref<1x32xf32, #tpu.memory_space<vmem>>, %arg4: memref<16x32xf32, #tpu.memory_space<vmem>>) attributes {dimension_semantics = [#tpu.dimension_semantics<parallel>], iteration_bounds = array<i64: 1>, scalar_prefetch = 0 : i64, scratch_operands = 0 : i64, tpu.core_type = #tpu.core_type<tc>, window_params = [{transform_indices = @transform_0, window_bounds = array<i64: 16, 32>}, {pipeline_mode = #tpu.pipeline_mode<synchronous>, transform_indices = @transform_1, window_bounds = array<i64: 1, 32>}, {pipeline_mode = #tpu.pipeline_mode<synchronous>, transform_indices = @transform_2, window_bounds = array<i64: 1, 32>}, {transform_indices = @transform_3, window_bounds = array<i64: 16, 32>}]} {
    %c0 = arith.constant 0 : index
    %c0_0 = arith.constant 0 : index
    %0 = vector.load %arg1[%c0, %c0_0] : memref<16x32xf32, #tpu.memory_space<vmem>>, vector<16x32xf32>
    %cst = arith.constant dense<0.000000e+00> : vector<16xf32>
    %1 = vector.multi_reduction <add>, %0, %cst [1] : vector<16x32xf32> to vector<16xf32>
    %2 = vector.shape_cast %1 : vector<16xf32> to vector<16x1xf32>
    %cst_1 = arith.constant 3.200000e+01 : f32
    %3 = vector.broadcast %cst_1 : f32 to vector<16x1xf32>
    %4 = arith.divf %2, %3 : vector<16x1xf32>
    %5 = vector.broadcast %4 : vector<16x1xf32> to vector<16x32xf32>
    %6 = arith.subf %0, %5 : vector<16x32xf32>
    %7 = arith.mulf %6, %6 : vector<16x32xf32>
    %cst_2 = arith.constant dense<0.000000e+00> : vector<16xf32>
    %8 = vector.multi_reduction <add>, %7, %cst_2 [1] : vector<16x32xf32> to vector<16xf32>
    %9 = vector.shape_cast %8 : vector<16xf32> to vector<16x1xf32>
    %cst_3 = arith.constant 3.200000e+01 : f32
    %10 = vector.broadcast %cst_3 : f32 to vector<16x1xf32>
    %11 = arith.divf %9, %10 : vector<16x1xf32>
    %cst_4 = arith.constant 9.99999974E-6 : f32
    %12 = vector.broadcast %cst_4 : f32 to vector<16x1xf32>
    %13 = arith.addf %11, %12 : vector<16x1xf32>
    %14 = math.rsqrt %13 : vector<16x1xf32>
    %15 = vector.broadcast %14 : vector<16x1xf32> to vector<16x32xf32>
    %16 = arith.mulf %6, %15 : vector<16x32xf32>
    %c0_5 = arith.constant 0 : index
    %c0_6 = arith.constant 0 : index
    %17 = vector.load %arg2[%c0_5, %c0_6] : memref<1x32xf32, #tpu.memory_space<vmem>>, vector<1x32xf32>
    %18 = vector.broadcast %17 : vector<1x32xf32> to vector<16x32xf32>
    %19 = arith.mulf %16, %18 : vector<16x32xf32>
    %c0_7 = arith.constant 0 : index
    %c0_8 = arith.constant 0 : index
    %20 = vector.load %arg3[%c0_7, %c0_8] : memref<1x32xf32, #tpu.memory_space<vmem>>, vector<1x32xf32>
    %21 = vector.broadcast %20 : vector<1x32xf32> to vector<16x32xf32>
    %22 = arith.addf %19, %21 : vector<16x32xf32>
    %c0_9 = arith.constant 0 : index
    %c0_10 = arith.constant 0 : index
    %23 = vector.load %arg4[%c0_9, %c0_10] : memref<16x32xf32, #tpu.memory_space<vmem>>, vector<16x32xf32>
    tpu.vector_store %arg4[%c0_9, %c0_10], %22 {strides = array<i32>} : memref<16x32xf32, #tpu.memory_space<vmem>>, vector<16x32xf32>,
    return
  }
  func.func @transform_0(%arg0: i32) -> (i32, i32) {
    %c0_i32 = arith.constant 0 : i32
    %c0_i32_0 = arith.constant 0 : i32
    return %arg0, %c0_i32 : i32, i32
  }
  func.func @transform_1(%arg0: i32) -> (i32, i32) {
    %c0_i32 = arith.constant 0 : i32
    %c0_i32_0 = arith.constant 0 : i32
    %c0_i32_1 = arith.constant 0 : i32
    return %c0_i32, %c0_i32_0 : i32, i32
  }
  func.func @transform_2(%arg0: i32) -> (i32, i32) {
    %c0_i32 = arith.constant 0 : i32
    %c0_i32_0 = arith.constant 0 : i32
    %c0_i32_1 = arith.constant 0 : i32
    return %c0_i32, %c0_i32_0 : i32, i32
  }
  func.func @transform_3(%arg0: i32) -> (i32, i32) {
    %c0_i32 = arith.constant 0 : i32
    %c0_i32_0 = arith.constant 0 : i32
    return %arg0, %c0_i32 : i32, i32
  }
}

</mosaic_0001>

<llo_original>
// kernel: tpu_custom_call.1
$region0: #{tpu_custom_call.1}
  #allocation0 [shape = 'u32[]', space=smem, size = 0x4, offset = 0x4, fixed_abs, tag = 'smem constant byte address 0x4 - core index']
  #allocation1 [shape = 'u32[72,128]{1,0:T(1,128)}', space=vmem, size = 0x9000, scoped, tag = 'internal scratch']
  %s0 = inlined_call_operand.hbm [shape: f32[16,32], index: 0, kind: input, shape index: {}]
  %s1 = inlined_call_operand.hbm [shape: f32[1,32], index: 1, kind: input, shape index: {}]
  %s2 = inlined_call_operand.vmem [shape: f32[1,32], index: 2, kind: input, shape index: {}]
  %s3 = inlined_call_operand.hbm [shape: f32[16,32], index: 3, kind: output, shape index: {}]
  %s4 = sld [smem:[#allocation0]]
  $region30: #{tpu_custom_call.1} parent=0
    _
  %s6 = ssub.s32 1, %s4
  %s7 = scalar_select 0, %s6, %s4
  $region1: #{tpu_custom_call.1} parent=0
    #allocation2 [shape = 'u8[8192]{0}', space=vmem, size = 0x2000, scoped, tag = 'input window, operand 0, single buffered']
    #allocation3 [shape = 's32[1]{0}', space=sflag, size = 0x4, scoped, tag = 'scoped memory for tpu_custom_call.1']
    #allocation4 [shape = 's32[1]{0}', space=sflag, size = 0x4, scoped, tag = 'scoped memory for tpu_custom_call.1']
    #allocation5 [shape = 'u8[512]{0}', space=vmem, size = 0x400, scoped, tag = 'input window, operand 1, single buffered']
    #allocation6 [shape = 's32[1]{0}', space=sflag, size = 0x4, scoped, tag = 'scoped memory for tpu_custom_call.1']
    #allocation7 [shape = 'u8[8192]{0}', space=vmem, size = 0x2000, scoped, tag = 'output window, operand 0, single buffered']
    %8 = vsyncpa [#allocation3], 0
    %9 = vsyncpa [#allocation6], 0
    %10 = vsyncpa [#allocation4], 0
    // Predicated region
    $region2: #{tpu_custom_call.1} parent=1 // pred_check
      _
    $region3: #{tpu_custom_call.1} parent=1 // pred_check_branch
      %12 = sbr.rel (0) target = $region5
    $region4: #{tpu_custom_call.1} parent=1 // pred_region
      %14 = vsyncadd [#allocation3], 0
      %s15 = sshll.u32 %s0, 4
      %s16 = int_to_ptr.hbm [resolvable:$true] %s15
      %s17 = sshll.u32 [#allocation2], 4
      %s18 = int_to_ptr.vmem [resolvable:$true] %s17
      %23 = dma.hbm_to_vmem [thread:$0]  %s16, 256, %s18, [#allocation3], 128, 128, 8
    $region5: #{tpu_custom_call.1} parent=1 // pred_fallthru
      _
    // Predicated region
    $region6: #{tpu_custom_call.1} parent=1 // pred_check
      _
    $region7: #{tpu_custom_call.1} parent=1 // pred_check_branch
      %25 = sbr.rel (0) target = $region9
    $region8: #{tpu_custom_call.1} parent=1 // pred_region
      %27 = vsyncadd [#allocation6], 0
      %s29 = sshll.u32 %s1, 4
      %s30 = int_to_ptr.hbm [resolvable:$true] %s29
      %s31 = sshll.u32 [#allocation5], 4
      %s32 = int_to_ptr.vmem [resolvable:$true] %s31
      %34 = dma.hbm_to_vmem [thread:$0]  %s30, 16, %s32, [#allocation6]
    $region9: #{tpu_custom_call.1} parent=1 // pred_fallthru
      _
    // Predicated region
    $region10: #{tpu_custom_call.1} parent=1 // pred_check
      _
    $region11: #{tpu_custom_call.1} parent=1 // pred_check_branch
      %36 = sbr.rel (0) target = $region13
    $region12: #{tpu_custom_call.1} parent=1 // pred_region
      _
    $region13: #{tpu_custom_call.1} parent=1 // pred_fallthru
      _
    // Predicated region
    $region14: #{tpu_custom_call.1} parent=1 // pred_check
      _
    $region15: #{tpu_custom_call.1} parent=1 // pred_check_branch
      %38 = sbr.rel (0) target = $region17
    $region16: #{tpu_custom_call.1} parent=1 // pred_region
      %40 = dma.done [#allocation3], 256
    $region17: #{tpu_custom_call.1} parent=1 // pred_fallthru
      _
    // Predicated region
    $region18: #{tpu_custom_call.1} parent=1 // pred_check
      _
    $region19: #{tpu_custom_call.1} parent=1 // pred_check_branch
      %42 = sbr.rel (0) target = $region21
    $region20: #{tpu_custom_call.1} parent=1 // pred_region
      %44 = dma.done [#allocation6], 16
    $region21: #{tpu_custom_call.1} parent=1 // pred_fallthru
      _
    %v45 = vld [vmem:[#allocation2] sm:$0xff]
    %v46 = vld [vmem:[#allocation2 + $0x8] sm:$0xff]
    %vm47 = vcmask 261120
    %v48 = vsel %vm47, %v45, 0.0
    %49 = vadd.xlane.f32.xlu0 %v48
    %v50 = vpop.xlane.xlu0 %49
    %v51 = vsel %vm47, %v46, 0.0
    %52 = vadd.xlane.f32.xlu0 %v51
    %v53 = vpop.xlane.xlu0 %52
    %v54 = vrcp.pop 32.0
    %v55 = vmul.f32 32.0, %v54
    %v56 = vsub.f32 1.0, %v55
    %v57 = vmul.f32 %v54, %v56
    %v58 = vadd.f32 %v54, %v57
    %vm59 = vweird.f32 %v54
    %v60 = vsel %vm59, %v54, %v58
    %v61 = vmul.f32 %v50, %v60
    %v62 = vmul.f32 %v53, %v60
    %v63 = vsub.f32 %v45, %v61
    %v64 = vsub.f32 %v46, %v62
    %v65 = vmul.f32 %v63, %v63
    %v66 = vmul.f32 %v64, %v64
    %v67 = vsel %vm47, %v65, 0.0
    %68 = vadd.xlane.f32.xlu0 %v67
    %v69 = vpop.xlane.xlu0 %68
    %v70 = vsel %vm47, %v66, 0.0
    %71 = vadd.xlane.f32.xlu0 %v70
    %v72 = vpop.xlane.xlu0 %71
    %v73 = vmul.f32 %v69, %v60
    %v74 = vmul.f32 %v72, %v60
    %v75 = vadd.f32 %v73, 1e-05
    %v76 = vadd.f32 %v74, 1e-05
    %v77 = vrsqrt.pop %v75
    %v78 = vmul.f32 %v77, %v75
    %v79 = vmul.f32 %v78, %v77
    %v80 = vmul.f32 0.5, %v79
    %v81 = vsub.f32 1.5, %v80
    %v82 = vmul.f32 %v77, %v81
    %vm83 = vweird.f32 %v75
    %vm84 = vweird.f32 %v77
    %vm85 = vmor %vm83, %vm84
    %v86 = vsel %vm85, %v77, %v82
    %v87 = vrsqrt.pop %v76
    %v88 = vmul.f32 %v87, %v76
    %v89 = vmul.f32 %v88, %v87
    %v90 = vmul.f32 0.5, %v89
    %v91 = vsub.f32 1.5, %v90
    %v92 = vmul.f32 %v87, %v91
    %vm93 = vweird.f32 %v76
    %vm94 = vweird.f32 %v87
    %vm95 = vmor %vm93, %vm94
    %v96 = vsel %vm95, %v87, %v92
    %v97 = vmul.f32 %v63, %v86
    %v98 = vmul.f32 %v64, %v96
    %v99 = vld [vmem:[#allocation5] sm:$0x1]
    %v101 = vperm.slane %v99, 0
    %v103 = vmul.f32 %v97, %v101
    %v104 = vmul.f32 %v98, %v101
    %v105 = vld [vmem:[%s2] sm:$0x1]
    %v107 = vperm.slane %v105, 0
    %v109 = vadd.f32 %v103, %v107
    %v110 = vadd.f32 %v104, %v107
    %111 = vst.msk [vmem:[#allocation7] sm:$0xff] %vm47, %v109
    %112 = vst.msk [vmem:[#allocation7 + $0x8] sm:$0xff] %vm47, %v110
    // Predicated region
    $region22: #{tpu_custom_call.1} parent=1 // pred_check
      _
    $region23: #{tpu_custom_call.1} parent=1 // pred_check_branch
      %114 = sbr.rel (0) target = $region25
    $region24: #{tpu_custom_call.1} parent=1 // pred_region
      %116 = vsyncadd [#allocation4], 0
      %s117 = sshll.u32 [#allocation7], 4
      %s118 = int_to_ptr.vmem [resolvable:$true] %s117
      %s119 = sshll.u32 %s3, 4
      %s120 = int_to_ptr.hbm [resolvable:$true] %s119
      %125 = dma.vmem_to_hbm [thread:$0]  %s118, 256, %s120, [#allocation4], 128, 128, 8
    $region25: #{tpu_custom_call.1} parent=1 // pred_fallthru
      _
    // Predicated region
    $region26: #{tpu_custom_call.1} parent=1 // pred_check
      _
    $region27: #{tpu_custom_call.1} parent=1 // pred_check_branch
      %127 = sbr.rel (0) target = $region29
    $region28: #{tpu_custom_call.1} parent=1 // pred_region
      %129 = dma.done [#allocation4], 256
    $region29: #{tpu_custom_call.1} parent=1 // pred_fallthru
      _
    %130 = vsyncpa [#allocation3], 1
    %131 = vsyncpa [#allocation6], 1
    %132 = vsyncpa [#allocation4], 1

</llo_original>
